<compile_context>
chip_gen: v7x
topology: tpu7x:2x2x1
jax: 0.10.0
libtpu: 0.0.40
codegen_flags: <defaults>
</compile_context>

<pallas_src>
import functools
import math

import jax
import jax.numpy as jnp
from jax import lax
from jax.experimental import pallas as pl
from jax.experimental.pallas import tpu as pltpu


def _rmsnorm_kernel(x_ref, g_ref, o_ref, *, eps, true_dim):
    # x_ref: (TILE_ROWS, DIM_P)   g_ref: (1, DIM_P)   o_ref: (TILE_ROWS, DIM_P)
    x = x_ref[...].astype(jnp.float32)
    # mean(x^2) over the *true* feature dim; padded lanes are zero so the sum is exact.
    ms = jnp.sum(x * x, axis=-1, keepdims=True) * (1.0 / true_dim)   # (tile, 1) XLU reduce
    # norm.clamp(min=eps) then reciprocal, fused: rsqrt on the otherwise-idle EUP slot.
    inv = lax.rsqrt(jnp.maximum(ms, eps * eps))
    g = g_ref[...].astype(jnp.float32)
    o_ref[...] = (x * inv * g).astype(o_ref.dtype)


def _pick_vmem_limit():
    # Generation-aware scoped-VMEM limit: ~48 MiB on v5e/v6e (128 MiB physical VMEM),
    # ~32 MiB on v7x (64 MiB physical). Fallback is safe on every generation.
    try:
        phys = int(pltpu.get_tpu_info().vmem_capacity_bytes)
        return int(min(48 << 20, phys // 2))
    except Exception:  # interpret mode / older jax / CPU tracing
        return 40 << 20


def rms_norm(x, g, *, eps=1e-8, tile_rows=None, vmem_limit_bytes=None):
    """RMSNorm over the last dim of x, matching the PyTorch module above."""
    orig_shape = x.shape
    dim = orig_shape[-1]
    rows = math.prod(orig_shape[:-1]) if len(orig_shape) > 1 else 1

    # Lane-dense layout: pad the feature dim up to a multiple of 128.
    dim_p = ((dim + 127) // 128) * 128
    x2 = x.reshape(rows, dim)
    g2 = g.reshape(1, dim)
    if dim_p != dim:
        x2 = jnp.pad(x2, ((0, 0), (0, dim_p - dim)))
        g2 = jnp.pad(g2, ((0, 0), (0, dim_p - dim)))

    itemsize = jnp.dtype(x.dtype).itemsize
    # Native sublane packing: 8 rows for f32, 16 for bf16/f16, 32 for int8/fp8.
    packing = max(8, 32 // itemsize)

    if vmem_limit_bytes is None:
        vmem_limit_bytes = _pick_vmem_limit()

    if tile_rows is None:
        # Per-row VMEM footprint of one tile:
        #   x block + out block, double-buffered : 2 streams * 2 buffers * itemsize * dim
        #   f32 intermediates (x upcast, x*x / scaled result) in compiler scratch: ~8 B * dim
        bytes_per_row = dim_p * (4 * itemsize + 8)
        budget = max(int(vmem_limit_bytes) - (4 << 20), 8 << 20)  # headroom: gamma, sems, misc
        tile_rows = budget // bytes_per_row
        tile_rows = max(packing, min(int(tile_rows), 4096))
        tile_rows -= tile_rows % packing

    # Don't allocate a block far larger than the input itself (small-shape path).
    rows_rounded = ((rows + packing - 1) // packing) * packing
    tile_rows = max(packing, min(int(tile_rows), rows_rounded))
    tile_rows -= tile_rows % packing

    # No HBM padding / slicing over rows: the grid may overrun the last (ragged) block;
    # OOB reads are padded, OOB output writes are masked, and rows are independent.
    grid = (pl.cdiv(rows, tile_rows),)

    out = pl.pallas_call(
        functools.partial(_rmsnorm_kernel, eps=float(eps), true_dim=dim),
        out_shape=jax.ShapeDtypeStruct((rows, dim_p), x.dtype),
        grid_spec=pltpu.PrefetchScalarGridSpec(
            num_scalar_prefetch=0,
            grid=grid,
            in_specs=[
                pl.BlockSpec((tile_rows, dim_p), lambda i: (i, 0)),
                pl.BlockSpec((1, dim_p), lambda i: (0, 0)),   # gamma: resident, not re-DMA'd
            ],
            out_specs=pl.BlockSpec((tile_rows, dim_p), lambda i: (i, 0)),
        ),
        compiler_params=pltpu.CompilerParams(
            # Row blocks are independent; "parallel" lets the runtime shard the row loop
            # across TensorCores on multi-TC chips (v7x). No effect on v5e/v6e (1 TC).
            # TODO(synk): if xprof on v7x shows one TC idle, switch to an explicit leading
            # grid axis of size 2 marked pltpu.CORE_PARALLEL with a per-core row split.
            dimension_semantics=("parallel",),
            vmem_limit_bytes=int(vmem_limit_bytes),
        ),
    )(x2, g2)

    if dim_p != dim:
        out = out[:, :dim]
    return out.reshape(orig_shape)


def _reference(x, g, eps):
    norm = jnp.sqrt(jnp.sum(x * x, axis=-1, keepdims=True)) * (x.shape[-1] ** -0.5)
    return x / jnp.maximum(norm, eps) * g


if __name__ == "__main__":
    key = jax.random.PRNGKey(0)
    kx, kg, kx2, kg2 = jax.random.split(key, 4)
    eps = 1e-8

    # Small shape implied by the module (padded-lane path: dim=32 -> padded to 128).
    batch, seq, dim = 2, 8, 32
    x = jax.random.normal(kx, (batch, seq, dim), dtype=jnp.float32)
    # Module init is g = ones(dim); use a perturbed (deterministic) gamma so the
    # scale path is actually exercised.
    g = 1.0 + 0.1 * jax.random.normal(kg, (dim,), dtype=jnp.float32)

    y = rms_norm(x, g, eps=eps)
    jax.block_until_ready(y)
    ref = _reference(x, g, eps)
    assert jnp.allclose(y, ref, atol=1e-5, rtol=1e-5), float(jnp.max(jnp.abs(y - ref)))

    # Lane-aligned path (dim multiple of 128, no padding).
    x2 = jax.random.normal(kx2, (batch, seq, 256), dtype=jnp.float32)
    g2 = 1.0 + 0.1 * jax.random.normal(kg2, (256,), dtype=jnp.float32)
    y2 = rms_norm(x2, g2, eps=eps)
    jax.block_until_ready(y2)
    ref2 = _reference(x2, g2, eps)
    assert jnp.allclose(y2, ref2, atol=1e-5, rtol=1e-5), float(jnp.max(jnp.abs(y2 - ref2)))

    print("KERNEL_OK")
</pallas_src>

<mosaic_0001>
module attributes {stable_mosaic.version = 11 : i64} {
  func.func @_rmsnorm_kernel(%arg0: i32, %arg1: memref<16x128xf32, #tpu.memory_space<vmem>>, %arg2: memref<1x128xf32, #tpu.memory_space<vmem>>, %arg3: memref<16x128xf32, #tpu.memory_space<vmem>>) attributes {dimension_semantics = [#tpu.dimension_semantics<parallel>], iteration_bounds = array<i64: 1>, scalar_prefetch = 0 : i64, scratch_operands = 0 : i64, tpu.core_type = #tpu.core_type<tc>, window_params = [{transform_indices = @transform_0, window_bounds = array<i64: 16, 128>}, {pipeline_mode = #tpu.pipeline_mode<synchronous>, transform_indices = @transform_1, window_bounds = array<i64: 1, 128>}, {transform_indices = @transform_2, window_bounds = array<i64: 16, 128>}]} {
    %c0 = arith.constant 0 : index
    %c0_0 = arith.constant 0 : index
    %0 = vector.load %arg1[%c0, %c0_0] : memref<16x128xf32, #tpu.memory_space<vmem>>, vector<16x128xf32>
    %1 = arith.mulf %0, %0 : vector<16x128xf32>
    %cst = arith.constant dense<0.000000e+00> : vector<16xf32>
    %2 = vector.multi_reduction <add>, %1, %cst [1] : vector<16x128xf32> to vector<16xf32>
    %3 = vector.shape_cast %2 : vector<16xf32> to vector<16x1xf32>
    %cst_1 = arith.constant 3.125000e-02 : f32
    %4 = vector.broadcast %cst_1 : f32 to vector<16x1xf32>
    %5 = arith.mulf %3, %4 : vector<16x1xf32>
    %cst_2 = arith.constant 1.000000e-16 : f32
    %6 = vector.broadcast %cst_2 : f32 to vector<16x1xf32>
    %7 = arith.maximumf %5, %6 : vector<16x1xf32>
    %8 = math.rsqrt %7 : vector<16x1xf32>
    %c0_3 = arith.constant 0 : index
    %c0_4 = arith.constant 0 : index
    %9 = vector.load %arg2[%c0_3, %c0_4] : memref<1x128xf32, #tpu.memory_space<vmem>>, vector<1x128xf32>
    %10 = vector.broadcast %8 : vector<16x1xf32> to vector<16x128xf32>
    %11 = arith.mulf %0, %10 : vector<16x128xf32>
    %12 = vector.broadcast %9 : vector<1x128xf32> to vector<16x128xf32>
    %13 = arith.mulf %11, %12 : vector<16x128xf32>
    %c0_5 = arith.constant 0 : index
    %c0_6 = arith.constant 0 : index
    %14 = vector.load %arg3[%c0_5, %c0_6] : memref<16x128xf32, #tpu.memory_space<vmem>>, vector<16x128xf32>
    tpu.vector_store %arg3[%c0_5, %c0_6], %13 {strides = array<i32>} : memref<16x128xf32, #tpu.memory_space<vmem>>, vector<16x128xf32>,
    return
  }
  func.func @transform_0(%arg0: i32) -> (i32, i32) {
    %c0_i32 = arith.constant 0 : i32
    %c0_i32_0 = arith.constant 0 : i32
    return %arg0, %c0_i32 : i32, i32
  }
  func.func @transform_1(%arg0: i32) -> (i32, i32) {
    %c0_i32 = arith.constant 0 : i32
    %c0_i32_0 = arith.constant 0 : i32
    %c0_i32_1 = arith.constant 0 : i32
    return %c0_i32, %c0_i32_0 : i32, i32
  }
  func.func @transform_2(%arg0: i32) -> (i32, i32) {
    %c0_i32 = arith.constant 0 : i32
    %c0_i32_0 = arith.constant 0 : i32
    return %arg0, %c0_i32 : i32, i32
  }
}

</mosaic_0001>

<llo_original>
// kernel: tpu_custom_call.1
$region0: #{tpu_custom_call.1}
  #allocation0 [shape = 'u32[]', space=smem, size = 0x4, offset = 0x4, fixed_abs, tag = 'smem constant byte address 0x4 - core index']
  #allocation1 [shape = 'u32[144,128]{1,0:T(1,128)}', space=vmem, size = 0x12000, scoped, tag = 'internal scratch']
  %s0 = inlined_call_operand.hbm [shape: f32[16,128], index: 0, kind: input, shape index: {}]
  %s1 = inlined_call_operand.vmem [shape: f32[1,128], index: 1, kind: input, shape index: {}]
  %s2 = inlined_call_operand.hbm [shape: f32[16,128], index: 2, kind: output, shape index: {}]
  %s3 = sld [smem:[#allocation0]]
  $region22: #{tpu_custom_call.1} parent=0
    _
  %s5 = ssub.s32 1, %s3
  %s6 = scalar_select 0, %s5, %s3
  $region1: #{tpu_custom_call.1} parent=0
    #allocation2 [shape = 'u8[8192]{0}', space=vmem, size = 0x2000, scoped, tag = 'input window, operand 0, single buffered']
    #allocation3 [shape = 's32[1]{0}', space=sflag, size = 0x4, scoped, tag = 'scoped memory for tpu_custom_call.1']
    #allocation4 [shape = 's32[1]{0}', space=sflag, size = 0x4, scoped, tag = 'scoped memory for tpu_custom_call.1']
    #allocation5 [shape = 'u8[8192]{0}', space=vmem, size = 0x2000, scoped, tag = 'output window, operand 0, single buffered']
    %7 = vsyncpa [#allocation3], 0
    %8 = vsyncpa [#allocation4], 0
    // Predicated region
    $region2: #{tpu_custom_call.1} parent=1 // pred_check
      _
    $region3: #{tpu_custom_call.1} parent=1 // pred_check_branch
      %10 = sbr.rel (0) target = $region5
    $region4: #{tpu_custom_call.1} parent=1 // pred_region
      %s12 = ssub.s32 256, 256
      %13 = vsyncadd [#allocation3], %s12
      %s14 = sshll.u32 [#allocation2], 4
      %s15 = int_to_ptr.vmem [resolvable:$true] %s14
      %20 = dma.hbm_to_vmem [thread:$0]  %s0, 256, %s15, [#allocation3], 128, 128, 8
    $region5: #{tpu_custom_call.1} parent=1 // pred_fallthru
      _
    // Predicated region
    $region6: #{tpu_custom_call.1} parent=1 // pred_check
      _
    $region7: #{tpu_custom_call.1} parent=1 // pred_check_branch
      %22 = sbr.rel (0) target = $region9
    $region8: #{tpu_custom_call.1} parent=1 // pred_region
      _
    $region9: #{tpu_custom_call.1} parent=1 // pred_fallthru
      _
    // Predicated region
    $region10: #{tpu_custom_call.1} parent=1 // pred_check
      _
    $region11: #{tpu_custom_call.1} parent=1 // pred_check_branch
      %24 = sbr.rel (0) target = $region13
    $region12: #{tpu_custom_call.1} parent=1 // pred_region
      %25 = dma.done [#allocation3], 256
    $region13: #{tpu_custom_call.1} parent=1 // pred_fallthru
      _
    %v26 = vld [vmem:[#allocation2] sm:$0xff]
    %v27 = vld [vmem:[#allocation2 + $0x8] sm:$0xff]
    %v28 = vmul.f32 %v26, %v26
    %v29 = vmul.f32 %v27, %v27
    %30 = vadd.xlane.f32.xlu0 %v28
    %v31 = vpop.xlane.xlu0 %30
    %32 = vadd.xlane.f32.xlu0 %v29
    %v33 = vpop.xlane.xlu0 %32
    %v34 = vmul.f32 %v31, 0.03125
    %v35 = vmul.f32 %v33, 0.03125
    %v36 = vmax.f32 %v34, 1e-16
    %v37 = vmax.f32 %v35, 1e-16
    %v38 = vrsqrt.pop %v36
    %v39 = vrsqrt.pop %v37
    %v40 = vld [vmem:[%s1] sm:$0x1]
    %v41 = vmul.f32 %v26, %v38
    %v42 = vmul.f32 %v27, %v39
    %v44 = vlaneseq
    %v45 = vshrl.u32 %v44, 7
    %v46 = vsub.s32 0, %v45
    %v47 = vrot.slane %v40, %v46
    %v49 = vmul.f32 %v41, %v47
    %v50 = vmul.f32 %v42, %v47
    %51 = vst [vmem:[#allocation5] sm:$0xff] %v49
    %52 = vst [vmem:[#allocation5 + $0x8] sm:$0xff] %v50
    // Predicated region
    $region14: #{tpu_custom_call.1} parent=1 // pred_check
      _
    $region15: #{tpu_custom_call.1} parent=1 // pred_check_branch
      %54 = sbr.rel (0) target = $region17
    $region16: #{tpu_custom_call.1} parent=1 // pred_region
      %s56 = ssub.s32 256, 256
      %57 = vsyncadd [#allocation4], %s56
      %s58 = sshll.u32 [#allocation5], 4
      %s59 = int_to_ptr.vmem [resolvable:$true] %s58
      %64 = dma.vmem_to_hbm [thread:$0]  %s59, 256, %s2, [#allocation4], 128, 128, 8
    $region17: #{tpu_custom_call.1} parent=1 // pred_fallthru
      _
    // Predicated region
    $region18: #{tpu_custom_call.1} parent=1 // pred_check
      _
    $region19: #{tpu_custom_call.1} parent=1 // pred_check_branch
      %66 = sbr.rel (0) target = $region21
    $region20: #{tpu_custom_call.1} parent=1 // pred_region
      %67 = dma.done [#allocation4], 256
    $region21: #{tpu_custom_call.1} parent=1 // pred_fallthru
      _
    %68 = vsyncpa [#allocation3], 1
    %69 = vsyncpa [#allocation4], 1

</llo_original>
